<compile_context>
chip_gen: v6e
topology: v6e:2x2x1
jax: 0.10.0
libtpu: 0.0.40
codegen_flags: <defaults>
</compile_context>

<pallas_src>
import functools

import jax
import jax.numpy as jnp
from jax import lax
from jax.experimental import pallas as pl
from jax.experimental.pallas import tpu as pltpu


def _linear_kernel(x_ref, w_ref, b_ref, o_ref):
    """One (tm, tn) output tile; full-D reduction in one MXU call + f32 epilogue."""
    acc = lax.dot_general(
        x_ref[...], w_ref[...],
        dimension_numbers=(((1,), (1,)), ((), ())),   # contract x.D with w.D
        preferred_element_type=jnp.float32,
    )
    o_ref[...] = (acc + b_ref[...]).astype(o_ref.dtype)


def _round_up(n, m):
    return ((n + m - 1) // m) * m


@functools.partial(jax.jit, static_argnames=("tm", "tn", "weight_dtype"))
def linear_probing_forward(x, weight, bias, *, tm=None, tn=None, weight_dtype=None):
    """y = x @ weight.T + bias   (PyTorch nn.Linear semantics).

    x:      (B, D) float32
    weight: (C, D) float32  -- PyTorch layout (out_features, in_features)
    bias:   (C,)   float32
    returns (B, C) float32
    """
    B, D = x.shape
    C, D2 = weight.shape
    assert D2 == D and bias.shape == (C,)

    if weight_dtype is not None:
        # Optional bf16 inputs: halves HBM traffic on the dominant (weight)
        # operand for the HBM-bound regime on v5e/v6e; accumulation stays f32.
        weight = weight.astype(weight_dtype)
        x = x.astype(weight_dtype)

    # ---- tile selection (shapes are static under jit) ------------------------
    # Prefer a single lane-dense output block for small problems; otherwise feed
    # the MXU large (up to 256 x 512) tiles. D is never tiled: the whole feature
    # dim is reduced inside one kernel invocation.
    if tm is None:
        tm = min(_round_up(B, 8), 256)
    if tn is None:
        tn = min(_round_up(C, 128), 512)

    def _footprint(tm_, tn_):   # double-buffered, f32-worst-case VMEM bytes
        return 2 * 4 * (tm_ * D + tn_ * D + tn_ + tm_ * tn_)

    # Keep the pipelined footprint well inside a v7x 64 MiB VMEM budget.
    while tm > 8 and _footprint(tm, tn) > (24 << 20):
        tm = max(8, tm // 2)
    while tn > 128 and _footprint(tm, tn) > (24 << 20):
        tn = max(128, _round_up(tn // 2, 128))
    # TODO(synk): for very large D (>~16K features) re-introduce a K grid axis.

    # ---- pad B / C to tile multiples instead of hard divisibility asserts ----
    Bp, Cp = _round_up(B, tm), _round_up(C, tn)
    if Bp != B:
        x = jnp.pad(x, ((0, Bp - B), (0, 0)))
    if Cp != C:
        weight = jnp.pad(weight, ((0, Cp - C), (0, 0)))
        bias = jnp.pad(bias, (0, Cp - C))
    b2 = bias.reshape(1, Cp).astype(jnp.float32)   # epilogue math stays f32

    grid = (Bp // tm, Cp // tn)
    vmem_bytes = min(max(_footprint(tm, tn) + (2 << 20), 4 << 20), 48 << 20)

    out = pl.pallas_call(
        _linear_kernel,
        out_shape=jax.ShapeDtypeStruct((Bp, Cp), jnp.float32),
        grid_spec=pltpu.PrefetchScalarGridSpec(
            num_scalar_prefetch=0,
            grid=grid,
            in_specs=[
                pl.BlockSpec((tm, D), lambda i, j: (i, 0)),   # x rows, full D
                pl.BlockSpec((tn, D), lambda i, j: (j, 0)),   # weight rows, full D
                pl.BlockSpec((1, tn), lambda i, j: (0, j)),   # bias slice
            ],
            out_specs=pl.BlockSpec((tm, tn), lambda i, j: (i, j)),
        ),
        compiler_params=pltpu.CompilerParams(
            dimension_semantics=("parallel", "parallel"),
            vmem_limit_bytes=vmem_bytes,
        ),
    )(x, weight, b2)

    return out[:B, :C]


if __name__ == "__main__":
    # Small shapes consistent with the module: features (output_dim) -> classes.
    B, D, C = 8, 256, 384

    key = jax.random.PRNGKey(0)
    kx, kw, kb = jax.random.split(key, 3)

    # Deterministic params (PyTorch nn.Linear default init: U(-1/sqrt(D), 1/sqrt(D))).
    bound = 1.0 / jnp.sqrt(jnp.float32(D))
    weight = jax.random.uniform(kw, (C, D), jnp.float32, -bound, bound)
    bias = jax.random.uniform(kb, (C,), jnp.float32, -bound, bound)
    x = jax.random.normal(kx, (B, D), jnp.float32)

    y = jax.block_until_ready(linear_probing_forward(x, weight, bias))

    # Correctness check against plain-JAX reference.
    y_ref = x @ weight.T + bias
    assert y.shape == (B, C)
    assert jnp.allclose(y, y_ref, atol=1e-3, rtol=1e-3), float(
        jnp.max(jnp.abs(y - y_ref))
    )

    print("KERNEL_OK")
</pallas_src>

<mosaic_0001>
module attributes {stable_mosaic.version = 11 : i64} {
  func.func @_linear_kernel(%arg0: i32, %arg1: i32, %arg2: memref<8x256xf32, #tpu.memory_space<vmem>>, %arg3: memref<384x256xf32, #tpu.memory_space<vmem>>, %arg4: memref<1x384xf32, #tpu.memory_space<vmem>>, %arg5: memref<8x384xf32, #tpu.memory_space<vmem>>) attributes {dimension_semantics = [#tpu.dimension_semantics<parallel>, #tpu.dimension_semantics<parallel>], iteration_bounds = array<i64: 1, 1>, scalar_prefetch = 0 : i64, scratch_operands = 0 : i64, tpu.core_type = #tpu.core_type<tc>, window_params = [{transform_indices = @transform_0, window_bounds = array<i64: 8, 256>}, {transform_indices = @transform_1, window_bounds = array<i64: 384, 256>}, {transform_indices = @transform_2, window_bounds = array<i64: 1, 384>}, {transform_indices = @transform_3, window_bounds = array<i64: 8, 384>}]} {
    %c0 = arith.constant 0 : index
    %c0_0 = arith.constant 0 : index
    %0 = vector.load %arg2[%c0, %c0_0] : memref<8x256xf32, #tpu.memory_space<vmem>>, vector<8x256xf32>
    %c0_1 = arith.constant 0 : index
    %c0_2 = arith.constant 0 : index
    %1 = vector.load %arg3[%c0_1, %c0_2] : memref<384x256xf32, #tpu.memory_space<vmem>>, vector<384x256xf32>
    %cst = arith.constant dense<0.000000e+00> : vector<8x384xf32>
    %2 = tpu.matmul %0, %1, %cst {dimension_numbers = #tpu.dot_dimension_numbers<[1], [1], [0], [0], [0, 0, 1, 0], [], []>} : vector<8x256xf32>, vector<384x256xf32>, vector<8x384xf32> -> vector<8x384xf32>
    %c0_3 = arith.constant 0 : index
    %c0_4 = arith.constant 0 : index
    %3 = vector.load %arg4[%c0_3, %c0_4] : memref<1x384xf32, #tpu.memory_space<vmem>>, vector<1x384xf32>
    %4 = vector.broadcast %3 : vector<1x384xf32> to vector<8x384xf32>
    %5 = arith.addf %2, %4 : vector<8x384xf32>
    %c0_5 = arith.constant 0 : index
    %c0_6 = arith.constant 0 : index
    %6 = vector.load %arg5[%c0_5, %c0_6] : memref<8x384xf32, #tpu.memory_space<vmem>>, vector<8x384xf32>
    tpu.vector_store %arg5[%c0_5, %c0_6], %5 {strides = array<i32>} : memref<8x384xf32, #tpu.memory_space<vmem>>, vector<8x384xf32>,
    return
  }
  func.func @transform_0(%arg0: i32, %arg1: i32) -> (i32, i32) {
    %c0_i32 = arith.constant 0 : i32
    %c0_i32_0 = arith.constant 0 : i32
    return %arg0, %c0_i32 : i32, i32
  }
  func.func @transform_1(%arg0: i32, %arg1: i32) -> (i32, i32) {
    %c0_i32 = arith.constant 0 : i32
    %c0_i32_0 = arith.constant 0 : i32
    return %arg1, %c0_i32 : i32, i32
  }
  func.func @transform_2(%arg0: i32, %arg1: i32) -> (i32, i32) {
    %c0_i32 = arith.constant 0 : i32
    %c0_i32_0 = arith.constant 0 : i32
    return %c0_i32, %arg1 : i32, i32
  }
  func.func @transform_3(%arg0: i32, %arg1: i32) -> (i32, i32) {
    %c0_i32 = arith.constant 0 : i32
    return %arg0, %arg1 : i32, i32
  }
}

</mosaic_0001>

<llo_original>
// kernel: linear_probing_forward.1
$region0: #{linear_probing_forward.1}
  #allocation0 [shape = 'u32[]', space=smem, size = 0x4, offset = 0x4, fixed_abs, tag = 'smem constant byte address 0x4 - core index']
  #allocation1 [shape = 'u32[144,128]{1,0:T(1,128)}', space=vmem, size = 0x12000, scoped, tag = 'internal scratch']
  %s0 = inlined_call_operand.hbm [shape: f32[8,256], index: 0, kind: input, shape index: {}]
  %s1 = inlined_call_operand.hbm [shape: f32[384,256], index: 1, kind: input, shape index: {}]
  %s2 = inlined_call_operand.vmem [shape: f32[1,384], index: 2, kind: input, shape index: {}]
  %s3 = inlined_call_operand.hbm [shape: f32[8,384], index: 3, kind: output, shape index: {}]
  %s4 = sld [smem:[#allocation0]]
  $region30: #{linear_probing_forward.1} parent=0
    _
  %s6 = ssub.s32 1, %s4
  %s7 = scalar_select 0, %s6, %s4
  $region1: #{linear_probing_forward.1} parent=0
    #allocation2 [shape = 'u8[8192]{0}', space=vmem, size = 0x2000, scoped, tag = 'input window, operand 0, single buffered']
    #allocation3 [shape = 's32[1]{0}', space=sflag, size = 0x4, scoped, tag = 'scoped memory for linear_probing_forward.1']
    #allocation4 [shape = 's32[1]{0}', space=sflag, size = 0x4, scoped, tag = 'scoped memory for linear_probing_forward.1']
    #allocation5 [shape = 'u8[393216]{0}', space=vmem, size = 0x60000, scoped, tag = 'input window, operand 1, single buffered']
    #allocation6 [shape = 's32[1]{0}', space=sflag, size = 0x4, scoped, tag = 'scoped memory for linear_probing_forward.1']
    #allocation7 [shape = 'u8[12288]{0}', space=vmem, size = 0x3000, scoped, tag = 'output window, operand 0, single buffered']
    %8 = vsyncpa [#allocation3], 0
    %9 = vsyncpa [#allocation6], 0
    %10 = vsyncpa [#allocation4], 0
    // Predicated region
    $region2: #{linear_probing_forward.1} parent=1 // pred_check
      _
    $region3: #{linear_probing_forward.1} parent=1 // pred_check_branch
      %12 = sbr.rel (0) target = $region5
    $region4: #{linear_probing_forward.1} parent=1 // pred_region
      %s14 = ssub.s32 256, 256
      %15 = vsyncadd [#allocation3], %s14
      %s17 = sshll.u32 [#allocation2], 4
      %s18 = int_to_ptr.vmem [resolvable:$true] %s17
      %20 = dma.hbm_to_vmem [thread:$0]  %s0, 256, %s18, [#allocation3]
    $region5: #{linear_probing_forward.1} parent=1 // pred_fallthru
      _
    // Predicated region
    $region6: #{linear_probing_forward.1} parent=1 // pred_check
      _
    $region7: #{linear_probing_forward.1} parent=1 // pred_check_branch
      %22 = sbr.rel (0) target = $region9
    $region8: #{linear_probing_forward.1} parent=1 // pred_region
      %s24 = ssub.s32 12288, 12288
      %25 = vsyncadd [#allocation6], %s24
      %s26 = sshll.u32 [#allocation5], 4
      %s27 = int_to_ptr.vmem [resolvable:$true] %s26
      %32 = dma.hbm_to_vmem [thread:$0]  %s1, 12288, %s27, [#allocation6], 256, 256, 16
    $region9: #{linear_probing_forward.1} parent=1 // pred_fallthru
      _
    // Predicated region
    $region10: #{linear_probing_forward.1} parent=1 // pred_check
      _
    $region11: #{linear_probing_forward.1} parent=1 // pred_check_branch
      %34 = sbr.rel (0) target = $region13
    $region12: #{linear_probing_forward.1} parent=1 // pred_region
      _
    $region13: #{linear_probing_forward.1} parent=1 // pred_fallthru
      _
    // Predicated region
    $region14: #{linear_probing_forward.1} parent=1 // pred_check
      _
    $region15: #{linear_probing_forward.1} parent=1 // pred_check_branch
      %36 = sbr.rel (0) target = $region17
    $region16: #{linear_probing_forward.1} parent=1 // pred_region
      %37 = dma.done [#allocation3], 256
    $region17: #{linear_probing_forward.1} parent=1 // pred_fallthru
      _
    // Predicated region
    $region18: #{linear_probing_forward.1} parent=1 // pred_check
      _
    $region19: #{linear_probing_forward.1} parent=1 // pred_check_branch
      %39 = sbr.rel (0) target = $region21
    $region20: #{linear_probing_forward.1} parent=1 // pred_region
      %40 = dma.done [#allocation6], 12288
    $region21: #{linear_probing_forward.1} parent=1 // pred_fallthru
      _
    %v41 = vld [vmem:[#allocation2] sm:$0xff]
    %v42 = vld [vmem:[#allocation2 + $0x8] sm:$0xff]
    %v43 = vld [vmem:[#allocation5] sm:$0xff]
    %v44 = vld [vmem:[#allocation5 + $0x8] sm:$0xff]
    %v45 = vld [vmem:[#allocation5 + $0x10] sm:$0xff]
    %v46 = vld [vmem:[#allocation5 + $0x18] sm:$0xff]
    %v47 = vld [vmem:[#allocation5 + $0x20] sm:$0xff]
    %v48 = vld [vmem:[#allocation5 + $0x28] sm:$0xff]
    %v49 = vld [vmem:[#allocation5 + $0x30] sm:$0xff]
    %v50 = vld [vmem:[#allocation5 + $0x38] sm:$0xff]
    %v51 = vld [vmem:[#allocation5 + $0x40] sm:$0xff]
    %v52 = vld [vmem:[#allocation5 + $0x48] sm:$0xff]
    %v53 = vld [vmem:[#allocation5 + $0x50] sm:$0xff]
    %v54 = vld [vmem:[#allocation5 + $0x58] sm:$0xff]
    %v55 = vld [vmem:[#allocation5 + $0x60] sm:$0xff]
    %v56 = vld [vmem:[#allocation5 + $0x68] sm:$0xff]
    %v57 = vld [vmem:[#allocation5 + $0x70] sm:$0xff]
    %v58 = vld [vmem:[#allocation5 + $0x78] sm:$0xff]
    %v59 = vld [vmem:[#allocation5 + $0x80] sm:$0xff]
    %v60 = vld [vmem:[#allocation5 + $0x88] sm:$0xff]
    %v61 = vld [vmem:[#allocation5 + $0x90] sm:$0xff]
    %v62 = vld [vmem:[#allocation5 + $0x98] sm:$0xff]
    %v63 = vld [vmem:[#allocation5 + $0xa0] sm:$0xff]
    %v64 = vld [vmem:[#allocation5 + $0xa8] sm:$0xff]
    %v65 = vld [vmem:[#allocation5 + $0xb0] sm:$0xff]
    %v66 = vld [vmem:[#allocation5 + $0xb8] sm:$0xff]
    %v67 = vld [vmem:[#allocation5 + $0xc0] sm:$0xff]
    %v68 = vld [vmem:[#allocation5 + $0xc8] sm:$0xff]
    %v69 = vld [vmem:[#allocation5 + $0xd0] sm:$0xff]
    %v70 = vld [vmem:[#allocation5 + $0xd8] sm:$0xff]
    %v71 = vld [vmem:[#allocation5 + $0xe0] sm:$0xff]
    %v72 = vld [vmem:[#allocation5 + $0xe8] sm:$0xff]
    %v73 = vld [vmem:[#allocation5 + $0xf0] sm:$0xff]
    %v74 = vld [vmem:[#allocation5 + $0xf8] sm:$0xff]
    %v75 = vld [vmem:[#allocation5 + $0x100] sm:$0xff]
    %v76 = vld [vmem:[#allocation5 + $0x108] sm:$0xff]
    %v77 = vld [vmem:[#allocation5 + $0x110] sm:$0xff]
    %v78 = vld [vmem:[#allocation5 + $0x118] sm:$0xff]
    %v79 = vld [vmem:[#allocation5 + $0x120] sm:$0xff]
    %v80 = vld [vmem:[#allocation5 + $0x128] sm:$0xff]
    %v81 = vld [vmem:[#allocation5 + $0x130] sm:$0xff]
    %v82 = vld [vmem:[#allocation5 + $0x138] sm:$0xff]
    %v83 = vld [vmem:[#allocation5 + $0x140] sm:$0xff]
    %v84 = vld [vmem:[#allocation5 + $0x148] sm:$0xff]
    %v85 = vld [vmem:[#allocation5 + $0x150] sm:$0xff]
    %v86 = vld [vmem:[#allocation5 + $0x158] sm:$0xff]
    %v87 = vld [vmem:[#allocation5 + $0x160] sm:$0xff]
    %v88 = vld [vmem:[#allocation5 + $0x168] sm:$0xff]
    %v89 = vld [vmem:[#allocation5 + $0x170] sm:$0xff]
    %v90 = vld [vmem:[#allocation5 + $0x178] sm:$0xff]
    %v91 = vld [vmem:[#allocation5 + $0x180] sm:$0xff]
    %v92 = vld [vmem:[#allocation5 + $0x188] sm:$0xff]
    %v93 = vld [vmem:[#allocation5 + $0x190] sm:$0xff]
    %v94 = vld [vmem:[#allocation5 + $0x198] sm:$0xff]
    %v95 = vld [vmem:[#allocation5 + $0x1a0] sm:$0xff]
    %v96 = vld [vmem:[#allocation5 + $0x1a8] sm:$0xff]
    %v97 = vld [vmem:[#allocation5 + $0x1b0] sm:$0xff]
    %v98 = vld [vmem:[#allocation5 + $0x1b8] sm:$0xff]
    %v99 = vld [vmem:[#allocation5 + $0x1c0] sm:$0xff]
    %v100 = vld [vmem:[#allocation5 + $0x1c8] sm:$0xff]
    %v101 = vld [vmem:[#allocation5 + $0x1d0] sm:$0xff]
    %v102 = vld [vmem:[#allocation5 + $0x1d8] sm:$0xff]
    %v103 = vld [vmem:[#allocation5 + $0x1e0] sm:$0xff]
    %v104 = vld [vmem:[#allocation5 + $0x1e8] sm:$0xff]
    %v105 = vld [vmem:[#allocation5 + $0x1f0] sm:$0xff]
    %v106 = vld [vmem:[#allocation5 + $0x1f8] sm:$0xff]
    %v107 = vld [vmem:[#allocation5 + $0x200] sm:$0xff]
    %v108 = vld [vmem:[#allocation5 + $0x208] sm:$0xff]
    %v109 = vld [vmem:[#allocation5 + $0x210] sm:$0xff]
    %v110 = vld [vmem:[#allocation5 + $0x218] sm:$0xff]
    %v111 = vld [vmem:[#allocation5 + $0x220] sm:$0xff]
    %v112 = vld [vmem:[#allocation5 + $0x228] sm:$0xff]
    %v113 = vld [vmem:[#allocation5 + $0x230] sm:$0xff]
    %v114 = vld [vmem:[#allocation5 + $0x238] sm:$0xff]
    %v115 = vld [vmem:[#allocation5 + $0x240] sm:$0xff]
    %v116 = vld [vmem:[#allocation5 + $0x248] sm:$0xff]
    %v117 = vld [vmem:[#allocation5 + $0x250] sm:$0xff]
    %v118 = vld [vmem:[#allocation5 + $0x258] sm:$0xff]
    %v119 = vld [vmem:[#allocation5 + $0x260] sm:$0xff]
    %v120 = vld [vmem:[#allocation5 + $0x268] sm:$0xff]
    %v121 = vld [vmem:[#allocation5 + $0x270] sm:$0xff]
    %v122 = vld [vmem:[#allocation5 + $0x278] sm:$0xff]
    %v123 = vld [vmem:[#allocation5 + $0x280] sm:$0xff]
    %v124 = vld [vmem:[#allocation5 + $0x288] sm:$0xff]
    %v125 = vld [vmem:[#allocation5 + $0x290] sm:$0xff]
    %v126 = vld [vmem:[#allocation5 + $0x298] sm:$0xff]
    %v127 = vld [vmem:[#allocation5 + $0x2a0] sm:$0xff]
    %v128 = vld [vmem:[#allocation5 + $0x2a8] sm:$0xff]
    %v129 = vld [vmem:[#allocation5 + $0x2b0] sm:$0xff]
    %v130 = vld [vmem:[#allocation5 + $0x2b8] sm:$0xff]
    %v131 = vld [vmem:[#allocation5 + $0x2c0] sm:$0xff]
    %v132 = vld [vmem:[#allocation5 + $0x2c8] sm:$0xff]
    %v133 = vld [vmem:[#allocation5 + $0x2d0] sm:$0xff]
    %v134 = vld [vmem:[#allocation5 + $0x2d8] sm:$0xff]
    %v135 = vld [vmem:[#allocation5 + $0x2e0] sm:$0xff]
    %v136 = vld [vmem:[#allocation5 + $0x2e8] sm:$0xff]
    %v137 = vld [vmem:[#allocation5 + $0x2f0] sm:$0xff]
    %v138 = vld [vmem:[#allocation5 + $0x2f8] sm:$0xff]
    %v139 = vld [vmem:[%s2] sm:$0x7]
    %v141 = vlaneseq
    %v142 = vshrl.u32 %v141, 7
    %v143 = vsub.s32 0, %v142
    %v144 = vrot.slane %v139, %v143
    %v145 = vlaneseq
    %v146 = vshrl.u32 %v145, 7
    %v147 = vsub.s32 1, %v146
    %v148 = vrot.slane %v139, %v147
    %v149 = vlaneseq
    %v150 = vshrl.u32 %v149, 7
    %v151 = vsub.s32 2, %v150
    %v152 = vrot.slane %v139, %v151
    %156 = vmatprep.subr.mxu0 %v74
    %157 = vmatpush1.xpose.msra.mxu0 %v73
    %158 = vmatprep.subr.mxu0 %v72
    %159 = vmatpush1.xpose.msra.mxu0 %v71
    %160 = vmatprep.subr.mxu0 %v70
    %161 = vmatpush1.xpose.msra.mxu0 %v69
    %162 = vmatprep.subr.mxu0 %v68
    %163 = vmatpush1.xpose.msra.mxu0 %v67
    %164 = vmatprep.subr.mxu0 %v66
    %165 = vmatpush1.xpose.msra.mxu0 %v65
    %166 = vmatprep.subr.mxu0 %v64
    %167 = vmatpush1.xpose.msra.mxu0 %v63
    %168 = vmatprep.subr.mxu0 %v62
    %169 = vmatpush1.xpose.msra.mxu0 %v61
    %170 = vmatprep.subr.mxu0 %v60
    %171 = vmatpush1.xpose.msra.mxu0 %v59
    %172 = vmatprep.subr.mxu0 %v58
    %173 = vmatpush1.xpose.msra.mxu0 %v57
    %174 = vmatprep.subr.mxu0 %v56
    %175 = vmatpush1.xpose.msra.mxu0 %v55
    %176 = vmatprep.subr.mxu0 %v54
    %177 = vmatpush1.xpose.msra.mxu0 %v53
    %178 = vmatprep.subr.mxu0 %v52
    %179 = vmatpush1.xpose.msra.mxu0 %v51
    %180 = vmatprep.subr.mxu0 %v50
    %181 = vmatpush1.xpose.msra.mxu0 %v49
    %182 = vmatprep.subr.mxu0 %v48
    %183 = vmatpush1.xpose.msra.mxu0 %v47
    %184 = vmatprep.subr.mxu0 %v46
    %185 = vmatpush1.xpose.msra.mxu0 %v45
    %186 = vmatprep.subr.mxu0 %v44
    %187 = vmatpush1.xpose.msra.mxu0 %v43
    %188 = vmatprep.subr.mxu0 %v106
    %189 = vmatpush2.xpose.msra.mxu0 %v105
    %190 = vmatprep.subr.mxu0 %v104
    %191 = vmatpush2.xpose.msra.mxu0 %v103
    %192 = vmatprep.subr.mxu0 %v102
    %193 = vmatpush2.xpose.msra.mxu0 %v101
    %194 = vmatprep.subr.mxu0 %v100
    %195 = vmatpush2.xpose.msra.mxu0 %v99
    %196 = vmatprep.subr.mxu0 %v98
    %197 = vmatpush2.xpose.msra.mxu0 %v97
    %198 = vmatprep.subr.mxu0 %v96
    %199 = vmatpush2.xpose.msra.mxu0 %v95
    %200 = vmatprep.subr.mxu0 %v94
    %201 = vmatpush2.xpose.msra.mxu0 %v93
    %202 = vmatprep.subr.mxu0 %v92
    %203 = vmatpush2.xpose.msra.mxu0 %v91
    %204 = vmatprep.subr.mxu0 %v90
    %205 = vmatpush2.xpose.msra.mxu0 %v89
    %206 = vmatprep.subr.mxu0 %v88
    %207 = vmatpush2.xpose.msra.mxu0 %v87
    %208 = vmatprep.subr.mxu0 %v86
    %209 = vmatpush2.xpose.msra.mxu0 %v85
    %210 = vmatprep.subr.mxu0 %v84
    %211 = vmatpush2.xpose.msra.mxu0 %v83
    %212 = vmatprep.subr.mxu0 %v82
    %213 = vmatpush2.xpose.msra.mxu0 %v81
    %214 = vmatprep.subr.mxu0 %v80
    %215 = vmatpush2.xpose.msra.mxu0 %v79
    %216 = vmatprep.subr.mxu0 %v78
    %217 = vmatpush2.xpose.msra.mxu0 %v77
    %218 = vmatprep.subr.mxu0 %v76
    %219 = vmatpush2.xpose.msra.mxu0 %v75
    %220 = vmatprep.mubr.f32.mxu0 %v42
    %221 = vmatmul.mubr.f32.gmra.mxu0 %v41
    %v222 = vpop.f32.mrf.mxu0
    %v223 = vadd.f32 %v144, %v222
    %v224 = vpop.f32.mrf.mxu0
    %v225 = vadd.f32 %v148, %v224
    %226 = vdwg.mxu0
    %227 = vmatprep.subr.mxu0 %v138
    %228 = vmatpush1.xpose.msra.mxu0 %v137
    %229 = vmatprep.subr.mxu0 %v136
    %230 = vmatpush1.xpose.msra.mxu0 %v135
    %231 = vmatprep.subr.mxu0 %v134
    %232 = vmatpush1.xpose.msra.mxu0 %v133
    %233 = vmatprep.subr.mxu0 %v132
    %234 = vmatpush1.xpose.msra.mxu0 %v131
    %235 = vmatprep.subr.mxu0 %v130
    %236 = vmatpush1.xpose.msra.mxu0 %v129
    %237 = vmatprep.subr.mxu0 %v128
    %238 = vmatpush1.xpose.msra.mxu0 %v127
    %239 = vmatprep.subr.mxu0 %v126
    %240 = vmatpush1.xpose.msra.mxu0 %v125
    %241 = vmatprep.subr.mxu0 %v124
    %242 = vmatpush1.xpose.msra.mxu0 %v123
    %243 = vmatprep.subr.mxu0 %v122
    %244 = vmatpush1.xpose.msra.mxu0 %v121
    %245 = vmatprep.subr.mxu0 %v120
    %246 = vmatpush1.xpose.msra.mxu0 %v119
    %247 = vmatprep.subr.mxu0 %v118
    %248 = vmatpush1.xpose.msra.mxu0 %v117
    %249 = vmatprep.subr.mxu0 %v116
    %250 = vmatpush1.xpose.msra.mxu0 %v115
    %251 = vmatprep.subr.mxu0 %v114
    %252 = vmatpush1.xpose.msra.mxu0 %v113
    %253 = vmatprep.subr.mxu0 %v112
    %254 = vmatpush1.xpose.msra.mxu0 %v111
    %255 = vmatprep.subr.mxu0 %v110
    %256 = vmatpush1.xpose.msra.mxu0 %v109
    %257 = vmatprep.subr.mxu0 %v108
    %258 = vmatpush1.xpose.msra.mxu0 %v107
    %259 = vmatprep.subr.mxu0 0.0
    %260 = vmatpush2.xpose.msra.mxu0 0.0
    %261 = vmatprep.subr.mxu0 0.0
    %262 = vmatpush2.xpose.msra.mxu0 0.0
    %263 = vmatprep.subr.mxu0 0.0
    %264 = vmatpush2.xpose.msra.mxu0 0.0
    %265 = vmatprep.subr.mxu0 0.0
    %266 = vmatpush2.xpose.msra.mxu0 0.0
    %267 = vmatprep.subr.mxu0 0.0
    %268 = vmatpush2.xpose.msra.mxu0 0.0
    %269 = vmatprep.subr.mxu0 0.0
    %270 = vmatpush2.xpose.msra.mxu0 0.0
    %271 = vmatprep.subr.mxu0 0.0
    %272 = vmatpush2.xpose.msra.mxu0 0.0
    %273 = vmatprep.subr.mxu0 0.0
    %274 = vmatpush2.xpose.msra.mxu0 0.0
    %275 = vmatprep.subr.mxu0 0.0
    %276 = vmatpush2.xpose.msra.mxu0 0.0
    %277 = vmatprep.subr.mxu0 0.0
    %278 = vmatpush2.xpose.msra.mxu0 0.0
    %279 = vmatprep.subr.mxu0 0.0
    %280 = vmatpush2.xpose.msra.mxu0 0.0
    %281 = vmatprep.subr.mxu0 0.0
    %282 = vmatpush2.xpose.msra.mxu0 0.0
    %283 = vmatprep.subr.mxu0 0.0
    %284 = vmatpush2.xpose.msra.mxu0 0.0
    %285 = vmatprep.subr.mxu0 0.0
    %286 = vmatpush2.xpose.msra.mxu0 0.0
    %287 = vmatprep.subr.mxu0 0.0
    %288 = vmatpush2.xpose.msra.mxu0 0.0
    %289 = vmatprep.subr.mxu0 0.0
    %290 = vmatpush2.xpose.msra.mxu0 0.0
    %291 = vmatprep.mubr.f32.mxu0 %v42
    %292 = vmatmul.mubr.f32.gmra.mxu0 %v41
    %v293 = vpop.f32.mrf.mxu0
    %v294 = vadd.f32 %v152, %v293
    %v295 = vpop.f32.mrf.mxu0
    %296 = vdwg.mxu0
    %297 = vst [vmem:[#allocation7] sm:$0xff] %v223
    %298 = vst [vmem:[#allocation7 + $0x8] sm:$0xff] %v225
    %299 = vst [vmem:[#allocation7 + $0x10] sm:$0xff] %v294
    // Predicated region
    $region22: #{linear_probing_forward.1} parent=1 // pred_check
      _
    $region23: #{linear_probing_forward.1} parent=1 // pred_check_branch
      %301 = sbr.rel (0) target = $region25
    $region24: #{linear_probing_forward.1} parent=1 // pred_region
      %s303 = ssub.s32 384, 384
      %304 = vsyncadd [#allocation4], %s303
      %s306 = sshll.u32 [#allocation7], 4
      %s307 = int_to_ptr.vmem [resolvable:$true] %s306
      %309 = dma.vmem_to_hbm [thread:$0]  %s307, 384, %s3, [#allocation4]
    $region25: #{linear_probing_forward.1} parent=1 // pred_fallthru
      _
    // Predicated region
    $region26: #{linear_probing_forward.1} parent=1 // pred_check
      _
    $region27: #{linear_probing_forward.1} parent=1 // pred_check_branch
      %311 = sbr.rel (0) target = $region29
    $region28: #{linear_probing_forward.1} parent=1 // pred_region
      %312 = dma.done [#allocation4], 384
    $region29: #{linear_probing_forward.1} parent=1 // pred_fallthru
      _
    %313 = vsyncpa [#allocation3], 1
    %314 = vsyncpa [#allocation6], 1
    %315 = vsyncpa [#allocation4], 1

</llo_original>
